<compile_context>
chip_gen: v7x
topology: tpu7x:2x2x1
jax: 0.10.0
libtpu: 0.0.40
codegen_flags: <defaults>
</compile_context>

<pallas_src>
import functools

import jax
import jax.numpy as jnp
import numpy as np
from jax.experimental import pallas as pl
from jax.experimental.pallas import tpu as pltpu

GRID_SIZE = 16
NUM_NEURONS_PER_CELL = 4
ENCODING_DURATION = 50.0
MAX_COLORS = 10

LANE = 128             # one packed row = 128 grid cells
MAX_BLOCK_ROWS = 1024  # (1 + 2*n)*1024*128*4B ~ 4.5 MiB/block @ n=4 -> ~9 MiB double-buffered
MIN_SPLIT_ROWS = 512   # never create grid steps smaller than this (DMA-efficiency knee)

# Base spike patterns from the reference module.
SPECIAL_PATTERNS = {
    1: (5.0, 15.0, 25.0, 35.0),
    2: (3.0, 7.0, 11.0, 15.0),
    4: (2.0, 8.0, 18.0, 32.0),
    5: (5.0, 10.0, 20.0, 45.0),
}
DEFAULT_PATTERN = (10.0, 20.0, 30.0, 40.0)   # colors 3, 6..9


def _round_up(x: int, m: int) -> int:
    return ((x + m - 1) // m) * m


def _pick_block_rows(rc: int) -> int:
    """Rows per block: single step for small problems, 8-aligned divisor otherwise."""
    if rc <= MIN_SPLIT_ROWS:
        return rc                                # one grid step, block = full extent
    if rc <= MAX_BLOCK_ROWS:
        # 2-way split (v7x dual TensorCore) only when each half stays DMA-efficient
        # and 8-aligned; on single-TC v5e/v6e this costs one ~0.35us step, negligible.
        if rc % 16 == 0 and rc // 2 >= MIN_SPLIT_ROWS:
            return rc // 2
        return rc
    # Large: prefer a divisor (no padding); otherwise fall back (pads the ragged tail).
    for br in range(MAX_BLOCK_ROWS, MIN_SPLIT_ROWS - 1, -8):
        if rc % br == 0:
            return br
    return MAX_BLOCK_ROWS


def _encode_kernel(color_ref, noise_ref, times_ref, *, num_neurons, duration):
    """colors: (TM, 128) int32; noise/times: (num_neurons, TM, 128) f32."""
    colors = color_ref[...]
    # Color predicates computed once and shared across all neuron slices (VPU).
    valid = (colors > 0) & (colors < MAX_COLORS)
    is1 = colors == 1
    is2 = colors == 2
    is4 = colors == 4
    is5 = colors == 5
    hi = jnp.float32(duration - 1.0)
    for n in range(num_neurons):                 # tiny static unroll (num_neurons <= 4)
        # Per-neuron pattern values are scalar constants -> pure compare/select chain.
        base = jnp.where(is1, SPECIAL_PATTERNS[1][n], DEFAULT_PATTERN[n])
        base = jnp.where(is2, SPECIAL_PATTERNS[2][n], base)
        base = jnp.where(is4, SPECIAL_PATTERNS[4][n], base)
        base = jnp.where(is5, SPECIAL_PATTERNS[5][n], base)
        base = jnp.where(valid, base, 0.0)
        times_ref[n] = jnp.clip(base + noise_ref[n], 0.0, hi)


@jax.jit
def grid_to_spike_encode(grid, noise):
    """grid: [B, H, W] int; noise: [num_neurons, B, H, W] f32 (neuron-major).

    Returns:
      spike_times: [num_neurons, B, H, W] f32; spike_times[i, b, h, w] is the
                   spike time of neuron (h*W + w)*num_neurons + i.
      valid_mask:  [B, H, W] bool (color in 1..9 -> spikes emitted).  Invalid
                   cells hold clip(noise, 0, 49); consumers must apply the mask.
    """
    num_neurons, Bn, Hn, Wn = noise.shape
    B, H, W = grid.shape
    assert (Bn, Hn, Wn) == (B, H, W)
    assert num_neurons <= len(DEFAULT_PATTERN), (
        "reference forward() emits at most 4 spikes per cell")

    N = B * H * W
    rc = pl.cdiv(N, LANE)                        # un-repeated color rows
    block_rows = _pick_block_rows(rc)
    rp = _round_up(rc, block_rows)
    pad = rp * LANE - N

    colors = grid.reshape(-1).astype(jnp.int32)
    noise_f = noise.reshape(num_neurons, -1).astype(jnp.float32)
    if pad:  # only for awkward sizes (N % 128 != 0 or no divisor block); costs one copy
        colors = jnp.pad(colors, (0, pad))
        noise_f = jnp.pad(noise_f, ((0, 0), (0, pad)))
    colors = colors.reshape(rp, LANE)
    noise_f = noise_f.reshape(num_neurons, rp, LANE)

    times = pl.pallas_call(
        functools.partial(_encode_kernel, num_neurons=num_neurons,
                          duration=ENCODING_DURATION),
        out_shape=jax.ShapeDtypeStruct((num_neurons, rp, LANE), jnp.float32),
        grid_spec=pl.GridSpec(
            grid=(rp // block_rows,),
            in_specs=[
                pl.BlockSpec((block_rows, LANE), lambda i: (i, 0)),
                pl.BlockSpec((num_neurons, block_rows, LANE), lambda i: (0, i, 0)),
            ],
            out_specs=pl.BlockSpec((num_neurons, block_rows, LANE),
                                   lambda i: (0, i, 0)),
        ),
        compiler_params=pltpu.CompilerParams(
            dimension_semantics=("parallel",),
            vmem_limit_bytes=32 * 1024 * 1024),
    )(colors, noise_f)

    flat = times.reshape(num_neurons, rp * LANE)
    if pad:
        flat = flat[:, :N]
    spike_times = flat.reshape(num_neurons, B, H, W)
    # Validity derived directly from the color ids (not from looked-up values).
    valid_mask = (grid > 0) & (grid < MAX_COLORS)
    return spike_times, valid_mask


def _init_unused_params(key):
    """Parameters declared in the module's __init__ but never used by forward()."""
    # TODO(synk): color_encoders / spatial_encoder are dead in the reference
    # forward(); shapes mirrored here only for faithfulness.
    ks = jax.random.split(key, 4)
    color_w = jax.random.normal(ks[0], (MAX_COLORS, NUM_NEURONS_PER_CELL, 1)) * 0.1
    color_b = jax.random.normal(ks[1], (MAX_COLORS, NUM_NEURONS_PER_CELL)) * 0.1
    conv_w = jax.random.normal(ks[2], (NUM_NEURONS_PER_CELL, 1, 3, 3)) * 0.1
    conv_b = jax.random.normal(ks[3], (NUM_NEURONS_PER_CELL,)) * 0.1
    return color_w, color_b, conv_w, conv_b


if __name__ == "__main__":
    key = jax.random.PRNGKey(0)
    k_grid, k_noise, k_params = jax.random.split(key, 3)

    _ = _init_unused_params(k_params)

    B, H, W = 2, GRID_SIZE, GRID_SIZE
    grid = jax.random.randint(k_grid, (B, H, W), 0, MAX_COLORS, dtype=jnp.int32)
    # Noise generated directly in the kernel's neuron-major layout, so the
    # wrapper never transposes or repeats anything.
    # TODO(synk): could instead be drawn in-kernel via pltpu.prng_seed /
    # prng_random_bits to drop this stream entirely (changes the RNG sequence,
    # so the exact-noise reference check below would no longer apply).
    noise = jax.random.normal(k_noise, (NUM_NEURONS_PER_CELL, B, H, W),
                              dtype=jnp.float32)

    spike_times, valid_mask = grid_to_spike_encode(grid, noise)
    jax.block_until_ready((spike_times, valid_mask))

    # Pure-JAX reference check (same noise).
    table = np.zeros((MAX_COLORS, NUM_NEURONS_PER_CELL), dtype=np.float32)
    for c in range(1, MAX_COLORS):
        table[c] = SPECIAL_PATTERNS.get(c, DEFAULT_PATTERN)[:NUM_NEURONS_PER_CELL]
    base_ref = jnp.moveaxis(jnp.asarray(table)[grid], -1, 0)          # (n, B, H, W)
    ref_times = jnp.clip(base_ref + noise, 0.0, ENCODING_DURATION - 1.0)
    ref_mask = (grid > 0) & (grid < MAX_COLORS)

    assert spike_times.shape == (NUM_NEURONS_PER_CELL, B, H, W)
    assert valid_mask.shape == (B, H, W)
    np.testing.assert_allclose(np.asarray(spike_times), np.asarray(ref_times),
                               rtol=1e-5, atol=1e-5)
    np.testing.assert_array_equal(np.asarray(valid_mask), np.asarray(ref_mask))

    # SpikeEvent-style tuple recovery (glue, not hot path):
    #   neuron_id = (h*W + w)*NUM_NEURONS_PER_CELL + i ; timestamp = spike_times[i, b, h, w]
    print("KERNEL_OK")
</pallas_src>

<mosaic_0001>
module attributes {stable_mosaic.version = 11 : i64} {
  func.func @_encode_kernel(%arg0: i32, %arg1: memref<4x128xi32, #tpu.memory_space<vmem>>, %arg2: memref<4x4x128xf32, #tpu.memory_space<vmem>>, %arg3: memref<4x4x128xf32, #tpu.memory_space<vmem>>) attributes {dimension_semantics = [#tpu.dimension_semantics<parallel>], iteration_bounds = array<i64: 1>, scalar_prefetch = 0 : i64, scratch_operands = 0 : i64, tpu.core_type = #tpu.core_type<tc>, window_params = [{transform_indices = @transform_0, window_bounds = array<i64: 4, 128>}, {transform_indices = @transform_1, window_bounds = array<i64: 4, 4, 128>}, {transform_indices = @transform_2, window_bounds = array<i64: 4, 4, 128>}]} {
    %c0 = arith.constant 0 : index
    %c0_0 = arith.constant 0 : index
    %0 = vector.load %arg1[%c0, %c0_0] : memref<4x128xi32, #tpu.memory_space<vmem>>, vector<4x128xi32>
    %c0_i32 = arith.constant 0 : i32
    %1 = vector.broadcast %c0_i32 : i32 to vector<4x128xi32>
    %2 = arith.cmpi sgt, %0, %1 : vector<4x128xi32>
    %c10_i32 = arith.constant 10 : i32
    %3 = vector.broadcast %c10_i32 : i32 to vector<4x128xi32>
    %4 = arith.cmpi slt, %0, %3 : vector<4x128xi32>
    %5 = arith.andi %2, %4 : vector<4x128xi1>
    %c1_i32 = arith.constant 1 : i32
    %6 = vector.broadcast %c1_i32 : i32 to vector<4x128xi32>
    %7 = arith.cmpi eq, %0, %6 : vector<4x128xi32>
    %c2_i32 = arith.constant 2 : i32
    %8 = vector.broadcast %c2_i32 : i32 to vector<4x128xi32>
    %9 = arith.cmpi eq, %0, %8 : vector<4x128xi32>
    %c4_i32 = arith.constant 4 : i32
    %10 = vector.broadcast %c4_i32 : i32 to vector<4x128xi32>
    %11 = arith.cmpi eq, %0, %10 : vector<4x128xi32>
    %c5_i32 = arith.constant 5 : i32
    %12 = vector.broadcast %c5_i32 : i32 to vector<4x128xi32>
    %13 = arith.cmpi eq, %0, %12 : vector<4x128xi32>
    %cst = arith.constant 5.000000e+00 : f32
    %cst_1 = arith.constant 1.000000e+01 : f32
    %14 = vector.broadcast %cst : f32 to vector<4x128xf32>
    %15 = vector.broadcast %cst_1 : f32 to vector<4x128xf32>
    %16 = arith.select %7, %14, %15 : vector<4x128xi1>, vector<4x128xf32>
    %cst_2 = arith.constant 3.000000e+00 : f32
    %17 = vector.broadcast %cst_2 : f32 to vector<4x128xf32>
    %18 = arith.select %9, %17, %16 : vector<4x128xi1>, vector<4x128xf32>
    %cst_3 = arith.constant 2.000000e+00 : f32
    %19 = vector.broadcast %cst_3 : f32 to vector<4x128xf32>
    %20 = arith.select %11, %19, %18 : vector<4x128xi1>, vector<4x128xf32>
    %cst_4 = arith.constant 5.000000e+00 : f32
    %21 = vector.broadcast %cst_4 : f32 to vector<4x128xf32>
    %22 = arith.select %13, %21, %20 : vector<4x128xi1>, vector<4x128xf32>
    %cst_5 = arith.constant 0.000000e+00 : f32
    %23 = vector.broadcast %cst_5 : f32 to vector<4x128xf32>
    %24 = arith.select %5, %22, %23 : vector<4x128xi1>, vector<4x128xf32>
    %c0_6 = arith.constant 0 : index
    %c0_7 = arith.constant 0 : index
    %c0_8 = arith.constant 0 : index
    %25 = vector.load %arg2[%c0_6, %c0_7, %c0_8] : memref<4x4x128xf32, #tpu.memory_space<vmem>>, vector<1x4x128xf32>
    %26 = vector.shape_cast %25 : vector<1x4x128xf32> to vector<4x128xf32>
    %27 = arith.addf %24, %26 : vector<4x128xf32>
    %cst_9 = arith.constant 0.000000e+00 : f32
    %cst_10 = arith.constant 4.900000e+01 : f32
    %28 = vector.broadcast %cst_9 : f32 to vector<4x128xf32>
    %29 = arith.maximumf %28, %27 : vector<4x128xf32>
    %30 = vector.broadcast %cst_10 : f32 to vector<4x128xf32>
    %31 = arith.minimumf %30, %29 : vector<4x128xf32>
    %c0_11 = arith.constant 0 : index
    %c0_12 = arith.constant 0 : index
    %c0_13 = arith.constant 0 : index
    %32 = vector.load %arg3[%c0_11, %c0_12, %c0_13] : memref<4x4x128xf32, #tpu.memory_space<vmem>>, vector<1x4x128xf32>
    %33 = vector.shape_cast %32 : vector<1x4x128xf32> to vector<4x128xf32>
    %34 = vector.shape_cast %31 : vector<4x128xf32> to vector<1x4x128xf32>
    tpu.vector_store %arg3[%c0_11, %c0_12, %c0_13], %34 {strides = array<i32>} : memref<4x4x128xf32, #tpu.memory_space<vmem>>, vector<1x4x128xf32>,
    %cst_14 = arith.constant 1.500000e+01 : f32
    %cst_15 = arith.constant 2.000000e+01 : f32
    %35 = vector.broadcast %cst_14 : f32 to vector<4x128xf32>
    %36 = vector.broadcast %cst_15 : f32 to vector<4x128xf32>
    %37 = arith.select %7, %35, %36 : vector<4x128xi1>, vector<4x128xf32>
    %cst_16 = arith.constant 7.000000e+00 : f32
    %38 = vector.broadcast %cst_16 : f32 to vector<4x128xf32>
    %39 = arith.select %9, %38, %37 : vector<4x128xi1>, vector<4x128xf32>
    %cst_17 = arith.constant 8.000000e+00 : f32
    %40 = vector.broadcast %cst_17 : f32 to vector<4x128xf32>
    %41 = arith.select %11, %40, %39 : vector<4x128xi1>, vector<4x128xf32>
    %cst_18 = arith.constant 1.000000e+01 : f32
    %42 = vector.broadcast %cst_18 : f32 to vector<4x128xf32>
    %43 = arith.select %13, %42, %41 : vector<4x128xi1>, vector<4x128xf32>
    %cst_19 = arith.constant 0.000000e+00 : f32
    %44 = vector.broadcast %cst_19 : f32 to vector<4x128xf32>
    %45 = arith.select %5, %43, %44 : vector<4x128xi1>, vector<4x128xf32>
    %c1 = arith.constant 1 : index
    %c0_20 = arith.constant 0 : index
    %c0_21 = arith.constant 0 : index
    %46 = vector.load %arg2[%c1, %c0_20, %c0_21] : memref<4x4x128xf32, #tpu.memory_space<vmem>>, vector<1x4x128xf32>
    %47 = vector.shape_cast %46 : vector<1x4x128xf32> to vector<4x128xf32>
    %48 = arith.addf %45, %47 : vector<4x128xf32>
    %cst_22 = arith.constant 0.000000e+00 : f32
    %cst_23 = arith.constant 4.900000e+01 : f32
    %49 = vector.broadcast %cst_22 : f32 to vector<4x128xf32>
    %50 = arith.maximumf %49, %48 : vector<4x128xf32>
    %51 = vector.broadcast %cst_23 : f32 to vector<4x128xf32>
    %52 = arith.minimumf %51, %50 : vector<4x128xf32>
    %c1_24 = arith.constant 1 : index
    %c0_25 = arith.constant 0 : index
    %c0_26 = arith.constant 0 : index
    %53 = vector.load %arg3[%c1_24, %c0_25, %c0_26] : memref<4x4x128xf32, #tpu.memory_space<vmem>>, vector<1x4x128xf32>
    %54 = vector.shape_cast %53 : vector<1x4x128xf32> to vector<4x128xf32>
    %55 = vector.shape_cast %52 : vector<4x128xf32> to vector<1x4x128xf32>
    tpu.vector_store %arg3[%c1_24, %c0_25, %c0_26], %55 {strides = array<i32>} : memref<4x4x128xf32, #tpu.memory_space<vmem>>, vector<1x4x128xf32>,
    %cst_27 = arith.constant 2.500000e+01 : f32
    %cst_28 = arith.constant 3.000000e+01 : f32
    %56 = vector.broadcast %cst_27 : f32 to vector<4x128xf32>
    %57 = vector.broadcast %cst_28 : f32 to vector<4x128xf32>
    %58 = arith.select %7, %56, %57 : vector<4x128xi1>, vector<4x128xf32>
    %cst_29 = arith.constant 1.100000e+01 : f32
    %59 = vector.broadcast %cst_29 : f32 to vector<4x128xf32>
    %60 = arith.select %9, %59, %58 : vector<4x128xi1>, vector<4x128xf32>
    %cst_30 = arith.constant 1.800000e+01 : f32
    %61 = vector.broadcast %cst_30 : f32 to vector<4x128xf32>
    %62 = arith.select %11, %61, %60 : vector<4x128xi1>, vector<4x128xf32>
    %cst_31 = arith.constant 2.000000e+01 : f32
    %63 = vector.broadcast %cst_31 : f32 to vector<4x128xf32>
    %64 = arith.select %13, %63, %62 : vector<4x128xi1>, vector<4x128xf32>
    %cst_32 = arith.constant 0.000000e+00 : f32
    %65 = vector.broadcast %cst_32 : f32 to vector<4x128xf32>
    %66 = arith.select %5, %64, %65 : vector<4x128xi1>, vector<4x128xf32>
    %c2 = arith.constant 2 : index
    %c0_33 = arith.constant 0 : index
    %c0_34 = arith.constant 0 : index
    %67 = vector.load %arg2[%c2, %c0_33, %c0_34] : memref<4x4x128xf32, #tpu.memory_space<vmem>>, vector<1x4x128xf32>
    %68 = vector.shape_cast %67 : vector<1x4x128xf32> to vector<4x128xf32>
    %69 = arith.addf %66, %68 : vector<4x128xf32>
    %cst_35 = arith.constant 0.000000e+00 : f32
    %cst_36 = arith.constant 4.900000e+01 : f32
    %70 = vector.broadcast %cst_35 : f32 to vector<4x128xf32>
    %71 = arith.maximumf %70, %69 : vector<4x128xf32>
    %72 = vector.broadcast %cst_36 : f32 to vector<4x128xf32>
    %73 = arith.minimumf %72, %71 : vector<4x128xf32>
    %c2_37 = arith.constant 2 : index
    %c0_38 = arith.constant 0 : index
    %c0_39 = arith.constant 0 : index
    %74 = vector.load %arg3[%c2_37, %c0_38, %c0_39] : memref<4x4x128xf32, #tpu.memory_space<vmem>>, vector<1x4x128xf32>
    %75 = vector.shape_cast %74 : vector<1x4x128xf32> to vector<4x128xf32>
    %76 = vector.shape_cast %73 : vector<4x128xf32> to vector<1x4x128xf32>
    tpu.vector_store %arg3[%c2_37, %c0_38, %c0_39], %76 {strides = array<i32>} : memref<4x4x128xf32, #tpu.memory_space<vmem>>, vector<1x4x128xf32>,
    %cst_40 = arith.constant 3.500000e+01 : f32
    %cst_41 = arith.constant 4.000000e+01 : f32
    %77 = vector.broadcast %cst_40 : f32 to vector<4x128xf32>
    %78 = vector.broadcast %cst_41 : f32 to vector<4x128xf32>
    %79 = arith.select %7, %77, %78 : vector<4x128xi1>, vector<4x128xf32>
    %cst_42 = arith.constant 1.500000e+01 : f32
    %80 = vector.broadcast %cst_42 : f32 to vector<4x128xf32>
    %81 = arith.select %9, %80, %79 : vector<4x128xi1>, vector<4x128xf32>
    %cst_43 = arith.constant 3.200000e+01 : f32
    %82 = vector.broadcast %cst_43 : f32 to vector<4x128xf32>
    %83 = arith.select %11, %82, %81 : vector<4x128xi1>, vector<4x128xf32>
    %cst_44 = arith.constant 4.500000e+01 : f32
    %84 = vector.broadcast %cst_44 : f32 to vector<4x128xf32>
    %85 = arith.select %13, %84, %83 : vector<4x128xi1>, vector<4x128xf32>
    %cst_45 = arith.constant 0.000000e+00 : f32
    %86 = vector.broadcast %cst_45 : f32 to vector<4x128xf32>
    %87 = arith.select %5, %85, %86 : vector<4x128xi1>, vector<4x128xf32>
    %c3 = arith.constant 3 : index
    %c0_46 = arith.constant 0 : index
    %c0_47 = arith.constant 0 : index
    %88 = vector.load %arg2[%c3, %c0_46, %c0_47] : memref<4x4x128xf32, #tpu.memory_space<vmem>>, vector<1x4x128xf32>
    %89 = vector.shape_cast %88 : vector<1x4x128xf32> to vector<4x128xf32>
    %90 = arith.addf %87, %89 : vector<4x128xf32>
    %cst_48 = arith.constant 0.000000e+00 : f32
    %cst_49 = arith.constant 4.900000e+01 : f32
    %91 = vector.broadcast %cst_48 : f32 to vector<4x128xf32>
    %92 = arith.maximumf %91, %90 : vector<4x128xf32>
    %93 = vector.broadcast %cst_49 : f32 to vector<4x128xf32>
    %94 = arith.minimumf %93, %92 : vector<4x128xf32>
    %c3_50 = arith.constant 3 : index
    %c0_51 = arith.constant 0 : index
    %c0_52 = arith.constant 0 : index
    %95 = vector.load %arg3[%c3_50, %c0_51, %c0_52] : memref<4x4x128xf32, #tpu.memory_space<vmem>>, vector<1x4x128xf32>
    %96 = vector.shape_cast %95 : vector<1x4x128xf32> to vector<4x128xf32>
    %97 = vector.shape_cast %94 : vector<4x128xf32> to vector<1x4x128xf32>
    tpu.vector_store %arg3[%c3_50, %c0_51, %c0_52], %97 {strides = array<i32>} : memref<4x4x128xf32, #tpu.memory_space<vmem>>, vector<1x4x128xf32>,
    return
  }
  func.func @transform_0(%arg0: i32) -> (i32, i32) {
    %c0_i32 = arith.constant 0 : i32
    %c0_i32_0 = arith.constant 0 : i32
    return %arg0, %c0_i32 : i32, i32
  }
  func.func @transform_1(%arg0: i32) -> (i32, i32, i32) {
    %c0_i32 = arith.constant 0 : i32
    %c0_i32_0 = arith.constant 0 : i32
    %c0_i32_1 = arith.constant 0 : i32
    return %c0_i32, %arg0, %c0_i32_0 : i32, i32, i32
  }
  func.func @transform_2(%arg0: i32) -> (i32, i32, i32) {
    %c0_i32 = arith.constant 0 : i32
    %c0_i32_0 = arith.constant 0 : i32
    %c0_i32_1 = arith.constant 0 : i32
    return %c0_i32, %arg0, %c0_i32_0 : i32, i32, i32
  }
}

</mosaic_0001>

<llo_original>
// kernel: grid_to_spike_encode.1
$region0: #{grid_to_spike_encode.1}
  #allocation0 [shape = 'u32[]', space=smem, size = 0x4, offset = 0x4, fixed_abs, tag = 'smem constant byte address 0x4 - core index']
  #allocation1 [shape = 'u32[144,128]{1,0:T(1,128)}', space=vmem, size = 0x12000, scoped, tag = 'internal scratch']
  %s0 = inlined_call_operand.vmem [shape: s32[4,128], index: 0, kind: input, shape index: {}]
  %s1 = inlined_call_operand.vmem [shape: f32[4,4,128], index: 1, kind: input, shape index: {}]
  %s2 = inlined_call_operand.vmem [shape: f32[4,4,128], index: 2, kind: output, shape index: {}]
  %s3 = sld [smem:[#allocation0]]
  $region18: #{grid_to_spike_encode.1} parent=0
    _
  %s5 = ssub.s32 1, %s3
  %s6 = scalar_select 0, %s5, %s3
  // Predicated region
  $region2: #{grid_to_spike_encode.1} parent=0 // pred_check
    _
  $region3: #{grid_to_spike_encode.1} parent=0 // pred_check_branch
    %8 = sbr.rel (0) target = $region5
  $region4: #{grid_to_spike_encode.1} parent=0 // pred_region
    _
  $region5: #{grid_to_spike_encode.1} parent=0 // pred_fallthru
    _
  // Predicated region
  $region6: #{grid_to_spike_encode.1} parent=0 // pred_check
    _
  $region7: #{grid_to_spike_encode.1} parent=0 // pred_check_branch
    %10 = sbr.rel (0) target = $region9
  $region8: #{grid_to_spike_encode.1} parent=0 // pred_region
    _
  $region9: #{grid_to_spike_encode.1} parent=0 // pred_fallthru
    _
  %v11 = vld [vmem:[%s0] sm:$0xf]
  %vm12 = vcmp.gt.s32.totalorder %v11, 0
  %vm13 = vcmp.lt.s32.totalorder %v11, 10
  %vm14 = vmand %vm12, %vm13
  %vm15 = vcmp.eq.s32.totalorder %v11, 1
  %vm16 = vcmp.eq.s32.totalorder %v11, 2
  %vm17 = vcmp.eq.s32.totalorder %v11, 4
  %vm18 = vcmp.eq.s32.totalorder %v11, 5
  %v19 = vsel %vm15, 5.0, 10.0
  %v20 = vsel %vm16, 3.0, %v19
  %v21 = vsel %vm17, 2.0, %v20
  %v22 = vsel %vm18, 5.0, %v21
  %v23 = vsel %vm14, %v22, 0.0
  %v24 = vld [vmem:[%s1] sm:$0xf]
  %v25 = vadd.f32 %v23, %v24
  %v26 = vmax.f32 %v25, 0.0
  %v27 = vmin.f32 %v26, 49.0
  %28 = vst [vmem:[%s2] sm:$0xf] %v27
  %v29 = vsel %vm15, 15.0, 20.0
  %v30 = vsel %vm16, 7.0, %v29
  %v31 = vsel %vm17, 8.0, %v30
  %v32 = vsel %vm18, 10.0, %v31
  %v33 = vsel %vm14, %v32, 0.0
  %s34 = scalar_lea.vmem %s1, 4
  %v35 = vld [vmem:[%s34] sm:$0xf]
  %v36 = vadd.f32 %v33, %v35
  %v37 = vmax.f32 %v36, 0.0
  %v38 = vmin.f32 %v37, 49.0
  %s39 = scalar_lea.vmem %s2, 4
  %40 = vst [vmem:[%s39] sm:$0xf] %v38
  %v41 = vsel %vm15, 25.0, 30.0
  %v42 = vsel %vm16, 11.0, %v41
  %v43 = vsel %vm17, 18.0, %v42
  %v44 = vsel %vm18, 20.0, %v43
  %v45 = vsel %vm14, %v44, 0.0
  %s46 = scalar_lea.vmem %s1, 8
  %v47 = vld [vmem:[%s46] sm:$0xf]
  %v48 = vadd.f32 %v45, %v47
  %v49 = vmax.f32 %v48, 0.0
  %v50 = vmin.f32 %v49, 49.0
  %s51 = scalar_lea.vmem %s2, 8
  %52 = vst [vmem:[%s51] sm:$0xf] %v50
  %v53 = vsel %vm15, 35.0, 40.0
  %v54 = vsel %vm16, 15.0, %v53
  %v55 = vsel %vm17, 32.0, %v54
  %v56 = vsel %vm18, 45.0, %v55
  %v57 = vsel %vm14, %v56, 0.0
  %s58 = scalar_lea.vmem %s1, 12
  %v59 = vld [vmem:[%s58] sm:$0xf]
  %v60 = vadd.f32 %v57, %v59
  %v61 = vmax.f32 %v60, 0.0
  %v62 = vmin.f32 %v61, 49.0
  %s63 = scalar_lea.vmem %s2, 12
  %64 = vst [vmem:[%s63] sm:$0xf] %v62
  // Predicated region
  $region10: #{grid_to_spike_encode.1} parent=0 // pred_check
    _
  $region11: #{grid_to_spike_encode.1} parent=0 // pred_check_branch
    %66 = sbr.rel (0) target = $region13
  $region12: #{grid_to_spike_encode.1} parent=0 // pred_region
    _
  $region13: #{grid_to_spike_encode.1} parent=0 // pred_fallthru
    _
  // Predicated region
  $region14: #{grid_to_spike_encode.1} parent=0 // pred_check
    _
  $region15: #{grid_to_spike_encode.1} parent=0 // pred_check_branch
    %68 = sbr.rel (0) target = $region17
  $region16: #{grid_to_spike_encode.1} parent=0 // pred_region
    _
  $region17: #{grid_to_spike_encode.1} parent=0 // pred_fallthru
    _

</llo_original>
